<compile_context>
chip_gen: v7x
topology: tpu7x:2x2x1
jax: 0.10.0
libtpu: 0.0.40
codegen_flags: <defaults>
</compile_context>

<pallas_src>
import functools

import jax
import jax.numpy as jnp
from jax.experimental import pallas as pl
from jax.experimental.pallas import tpu as pltpu


def _round_up(n, m):
    return ((n + m - 1) // m) * m


# ---------------------------------------------------------------------------
# Kernel: relu(x @ w1 + b1) @ w23 + b23   (all matmuls accumulate in f32)
# ---------------------------------------------------------------------------
def _fused_kernel(x_ref, w1_ref, b1_ref, w23_ref, b23_ref, o_ref):
    # ff[0]: Linear(input_dim, ff_dim) -- MXU, f32 accumulation
    h = jnp.dot(x_ref[...], w1_ref[...], preferred_element_type=jnp.float32)
    h = h + b1_ref[...]                      # bias in f32 (VPU)
    # ff[1]: Dropout(p) -> identity (eval) ; ff[2]: ReLU (f32 VPU)
    h = jnp.maximum(h, 0.0)
    # ff[3] + wrapped model Linear, folded into one matmul (lane-padded out)
    out = jnp.dot(h.astype(w23_ref.dtype), w23_ref[...],
                  preferred_element_type=jnp.float32)
    out = out + b23_ref[...]
    o_ref[...] = out.astype(o_ref.dtype)


# ---------------------------------------------------------------------------
# Param preparation (done ONCE, outside the hot path)
# ---------------------------------------------------------------------------
def prepare_params(raw, *, compute_dtype=jnp.float32, lane_pad=128):
    """Fold ff[3] with the wrapped Linear and lane-pad the output columns."""
    w1, b1 = raw["w1"], raw["b1"]
    w2, b2 = raw["w2"], raw["b2"]
    wm, bm = raw["wm"], raw["bm"]

    # Exact (up to f32 rounding) fold: no nonlinearity between the two Linears.
    w23 = jnp.dot(w2.astype(jnp.float32), wm.astype(jnp.float32))
    b23 = jnp.dot(b2.astype(jnp.float32), wm.astype(jnp.float32)) + bm.astype(jnp.float32)

    out_dim = wm.shape[1]
    out_pad = _round_up(out_dim, lane_pad)
    if out_pad != out_dim:
        w23 = jnp.pad(w23, ((0, 0), (0, out_pad - out_dim)))
        b23 = jnp.pad(b23, ((0, 0), (0, out_pad - out_dim)))

    return {
        "w1": w1.astype(compute_dtype),
        "b1": b1.astype(jnp.float32),          # biases / elementwise stay f32
        "w23": w23.astype(compute_dtype),
        "b23": b23.astype(jnp.float32),
    }


# ---------------------------------------------------------------------------
# Wrapper
# ---------------------------------------------------------------------------
def model_with_input_layer_forward(x, prepared, *, out_dim, block_b=512):
    """x: [B, input_dim]. Returns [B, out_dim] (same dtype as x)."""
    w1, b1 = prepared["w1"], prepared["b1"]
    w23, b23 = prepared["w23"], prepared["b23"]

    compute_dtype = w1.dtype
    B, in_dim = x.shape
    ff_dim = w1.shape[1]
    out_pad = w23.shape[1]

    # Sublane-aligned batch tile (8 rows for f32, 16 for bf16), cdiv + pad
    # so any batch size works; keep >=2 grid steps for large B (v7x megacore).
    sub = 8 * (4 // jnp.dtype(compute_dtype).itemsize)
    bb = _round_up(min(block_b, _round_up(B, sub)), sub)
    B_pad = _round_up(B, bb)

    xc = x.astype(compute_dtype)
    if B_pad != B:
        xc = jnp.pad(xc, ((0, B_pad - B), (0, 0)))

    grid = (B_pad // bb,)

    flops = 2 * B_pad * (in_dim * ff_dim + ff_dim * out_pad)
    bytes_accessed = (
        xc.size * xc.dtype.itemsize
        + w1.size * w1.dtype.itemsize + b1.size * b1.dtype.itemsize
        + w23.size * w23.dtype.itemsize + b23.size * b23.dtype.itemsize
        + B_pad * out_pad * 4
    )

    out_padded = pl.pallas_call(
        _fused_kernel,
        out_shape=jax.ShapeDtypeStruct((B_pad, out_pad), jnp.float32),
        grid=grid,
        in_specs=[
            pl.BlockSpec((bb, in_dim), lambda i: (i, 0)),        # x tile
            pl.BlockSpec((in_dim, ff_dim), lambda i: (0, 0)),    # w1 (constant)
            pl.BlockSpec((1, ff_dim), lambda i: (0, 0)),         # b1
            pl.BlockSpec((ff_dim, out_pad), lambda i: (0, 0)),   # w23 (folded)
            pl.BlockSpec((1, out_pad), lambda i: (0, 0)),        # b23
        ],
        out_specs=pl.BlockSpec((bb, out_pad), lambda i: (i, 0)),
        compiler_params=pltpu.CompilerParams(
            dimension_semantics=("parallel",),
            vmem_limit_bytes=64 << 20,
        ),
        cost_estimate=pl.CostEstimate(
            flops=int(flops), transcendentals=0, bytes_accessed=int(bytes_accessed)),
    )(xc, w1, b1, w23, b23)

    return out_padded[:B, :out_dim].astype(x.dtype)


# ---------------------------------------------------------------------------
# Reference init & forward (unfused, matches the PyTorch module in eval mode)
# ---------------------------------------------------------------------------
def init_params(key, input_dim, ff_dim, model_in_dim, model_out_dim):
    """PyTorch-style uniform(-1/sqrt(fan_in), 1/sqrt(fan_in)) init; weights [in,out]."""
    ks = jax.random.split(key, 6)

    def lin(kw, kb, fan_in, fan_out):
        bound = 1.0 / jnp.sqrt(fan_in)
        w = jax.random.uniform(kw, (fan_in, fan_out), jnp.float32, -bound, bound)
        b = jax.random.uniform(kb, (1, fan_out), jnp.float32, -bound, bound)
        return w, b

    w1, b1 = lin(ks[0], ks[1], input_dim, ff_dim)
    w2, b2 = lin(ks[2], ks[3], ff_dim, model_in_dim)
    wm, bm = lin(ks[4], ks[5], model_in_dim, model_out_dim)
    return {"w1": w1, "b1": b1, "w2": w2, "b2": b2, "wm": wm, "bm": bm}


def reference_forward(x, p):
    h = jnp.maximum(x @ p["w1"] + p["b1"], 0.0)   # Linear -> Dropout(eval) -> ReLU
    y = h @ p["w2"] + p["b2"]                     # Linear(ff_dim, output_dim)
    return y @ p["wm"] + p["bm"]                  # wrapped model (Linear)


if __name__ == "__main__":
    batch = 8
    input_dim = 32       # ff input
    ff_dim = 64          # ff hidden
    model_in_dim = 32    # == model.output_dim, the ff second Linear's out width
    model_out_dim = 16   # wrapped model's own output width

    key = jax.random.PRNGKey(0)
    kx, kp = jax.random.split(key)
    x = jax.random.normal(kx, (batch, input_dim), dtype=jnp.float32)
    raw = init_params(kp, input_dim, ff_dim, model_in_dim, model_out_dim)
    ref = reference_forward(x, raw)

    # --- f32 operand path ---------------------------------------------------
    prep_f32 = prepare_params(raw, compute_dtype=jnp.float32)
    fwd = jax.jit(functools.partial(
        model_with_input_layer_forward, out_dim=model_out_dim, block_b=512))
    out = jax.block_until_ready(fwd(x, prep_f32))
    assert out.shape == (batch, model_out_dim)
    assert jnp.allclose(out, ref, atol=1e-4, rtol=1e-4), "f32 mismatch vs reference"

    # ragged batch exercises the cdiv + padding path (no divisibility assert)
    x_odd = jax.random.normal(kx, (13, input_dim), dtype=jnp.float32)
    out_odd = jax.block_until_ready(fwd(x_odd, prep_f32))
    assert out_odd.shape == (13, model_out_dim)
    assert jnp.allclose(out_odd, reference_forward(x_odd, raw),
                        atol=1e-4, rtol=1e-4), "ragged-batch mismatch"

    # --- bf16 operand path (v6e/v7x MXU; f32 accumulation, bias, ReLU) ------
    prep_bf16 = prepare_params(raw, compute_dtype=jnp.bfloat16)
    out_bf16 = jax.block_until_ready(fwd(x, prep_bf16))
    assert out_bf16.shape == (batch, model_out_dim)
    assert jnp.allclose(out_bf16, ref, atol=5e-2, rtol=5e-2), "bf16 mismatch"

    print("KERNEL_OK")
</pallas_src>

<mosaic_0001>
module attributes {stable_mosaic.version = 11 : i64} {
  func.func @_fused_kernel(%arg0: i32, %arg1: memref<8x32xf32, #tpu.memory_space<vmem>>, %arg2: memref<32x64xf32, #tpu.memory_space<vmem>>, %arg3: memref<1x64xf32, #tpu.memory_space<vmem>>, %arg4: memref<64x128xf32, #tpu.memory_space<vmem>>, %arg5: memref<1x128xf32, #tpu.memory_space<vmem>>, %arg6: memref<8x128xf32, #tpu.memory_space<vmem>>) attributes {dimension_semantics = [#tpu.dimension_semantics<parallel>], iteration_bounds = array<i64: 1>, scalar_prefetch = 0 : i64, scratch_operands = 0 : i64, tpu.core_type = #tpu.core_type<tc>, window_params = [{transform_indices = @transform_0, window_bounds = array<i64: 8, 32>}, {pipeline_mode = #tpu.pipeline_mode<synchronous>, transform_indices = @transform_1, window_bounds = array<i64: 32, 64>}, {pipeline_mode = #tpu.pipeline_mode<synchronous>, transform_indices = @transform_2, window_bounds = array<i64: 1, 64>}, {pipeline_mode = #tpu.pipeline_mode<synchronous>, transform_indices = @transform_3, window_bounds = array<i64: 64, 128>}, {pipeline_mode = #tpu.pipeline_mode<synchronous>, transform_indices = @transform_4, window_bounds = array<i64: 1, 128>}, {transform_indices = @transform_5, window_bounds = array<i64: 8, 128>}]} {
    %c0 = arith.constant 0 : index
    %c0_0 = arith.constant 0 : index
    %0 = vector.load %arg1[%c0, %c0_0] : memref<8x32xf32, #tpu.memory_space<vmem>>, vector<8x32xf32>
    %c0_1 = arith.constant 0 : index
    %c0_2 = arith.constant 0 : index
    %1 = vector.load %arg2[%c0_1, %c0_2] : memref<32x64xf32, #tpu.memory_space<vmem>>, vector<32x64xf32>
    %cst = arith.constant dense<0.000000e+00> : vector<8x64xf32>
    %2 = tpu.matmul %0, %1, %cst {dimension_numbers = #tpu.dot_dimension_numbers<[1], [0], [0], [1], [0, 0, 1, 1], [], []>} : vector<8x32xf32>, vector<32x64xf32>, vector<8x64xf32> -> vector<8x64xf32>
    %c0_3 = arith.constant 0 : index
    %c0_4 = arith.constant 0 : index
    %3 = vector.load %arg3[%c0_3, %c0_4] : memref<1x64xf32, #tpu.memory_space<vmem>>, vector<1x64xf32>
    %4 = vector.broadcast %3 : vector<1x64xf32> to vector<8x64xf32>
    %5 = arith.addf %2, %4 : vector<8x64xf32>
    %cst_5 = arith.constant 0.000000e+00 : f32
    %6 = vector.broadcast %cst_5 : f32 to vector<8x64xf32>
    %7 = arith.maximumf %5, %6 : vector<8x64xf32>
    %c0_6 = arith.constant 0 : index
    %c0_7 = arith.constant 0 : index
    %8 = vector.load %arg4[%c0_6, %c0_7] : memref<64x128xf32, #tpu.memory_space<vmem>>, vector<64x128xf32>
    %cst_8 = arith.constant dense<0.000000e+00> : vector<8x128xf32>
    %9 = tpu.matmul %7, %8, %cst_8 {dimension_numbers = #tpu.dot_dimension_numbers<[1], [0], [0], [1], [0, 0, 1, 1], [], []>} : vector<8x64xf32>, vector<64x128xf32>, vector<8x128xf32> -> vector<8x128xf32>
    %c0_9 = arith.constant 0 : index
    %c0_10 = arith.constant 0 : index
    %10 = vector.load %arg5[%c0_9, %c0_10] : memref<1x128xf32, #tpu.memory_space<vmem>>, vector<1x128xf32>
    %11 = vector.broadcast %10 : vector<1x128xf32> to vector<8x128xf32>
    %12 = arith.addf %9, %11 : vector<8x128xf32>
    %c0_11 = arith.constant 0 : index
    %c0_12 = arith.constant 0 : index
    %13 = vector.load %arg6[%c0_11, %c0_12] : memref<8x128xf32, #tpu.memory_space<vmem>>, vector<8x128xf32>
    tpu.vector_store %arg6[%c0_11, %c0_12], %12 {strides = array<i32>} : memref<8x128xf32, #tpu.memory_space<vmem>>, vector<8x128xf32>,
    return
  }
  func.func @transform_0(%arg0: i32) -> (i32, i32) {
    %c0_i32 = arith.constant 0 : i32
    %c0_i32_0 = arith.constant 0 : i32
    return %arg0, %c0_i32 : i32, i32
  }
  func.func @transform_1(%arg0: i32) -> (i32, i32) {
    %c0_i32 = arith.constant 0 : i32
    %c0_i32_0 = arith.constant 0 : i32
    %c0_i32_1 = arith.constant 0 : i32
    return %c0_i32, %c0_i32_0 : i32, i32
  }
  func.func @transform_2(%arg0: i32) -> (i32, i32) {
    %c0_i32 = arith.constant 0 : i32
    %c0_i32_0 = arith.constant 0 : i32
    %c0_i32_1 = arith.constant 0 : i32
    return %c0_i32, %c0_i32_0 : i32, i32
  }
  func.func @transform_3(%arg0: i32) -> (i32, i32) {
    %c0_i32 = arith.constant 0 : i32
    %c0_i32_0 = arith.constant 0 : i32
    %c0_i32_1 = arith.constant 0 : i32
    return %c0_i32, %c0_i32_0 : i32, i32
  }
  func.func @transform_4(%arg0: i32) -> (i32, i32) {
    %c0_i32 = arith.constant 0 : i32
    %c0_i32_0 = arith.constant 0 : i32
    %c0_i32_1 = arith.constant 0 : i32
    return %c0_i32, %c0_i32_0 : i32, i32
  }
  func.func @transform_5(%arg0: i32) -> (i32, i32) {
    %c0_i32 = arith.constant 0 : i32
    %c0_i32_0 = arith.constant 0 : i32
    return %arg0, %c0_i32 : i32, i32
  }
}

</mosaic_0001>

<llo_original>
// kernel: model_with_input_layer_forward.1
$region0: #{model_with_input_layer_forward.1}
  #allocation0 [shape = 'u32[]', space=smem, size = 0x4, offset = 0x4, fixed_abs, tag = 'smem constant byte address 0x4 - core index']
  #allocation1 [shape = 'u32[144,128]{1,0:T(1,128)}', space=vmem, size = 0x12000, scoped, tag = 'internal scratch']
  %s0 = inlined_call_operand.hbm [shape: f32[8,32], index: 0, kind: input, shape index: {}]
  %s1 = inlined_call_operand.hbm [shape: f32[32,64], index: 1, kind: input, shape index: {}]
  %s2 = inlined_call_operand.hbm [shape: f32[1,64], index: 2, kind: input, shape index: {}]
  %s3 = inlined_call_operand.hbm [shape: f32[64,128], index: 3, kind: input, shape index: {}]
  %s4 = inlined_call_operand.hbm [shape: f32[1,128], index: 4, kind: input, shape index: {}]
  %s5 = inlined_call_operand.hbm [shape: f32[8,128], index: 5, kind: output, shape index: {}]
  %s6 = sld [smem:[#allocation0]]
  $region50: #{model_with_input_layer_forward.1} parent=0
    _
  %s8 = ssub.s32 1, %s6
  %s9 = scalar_select 0, %s8, %s6
  $region1: #{model_with_input_layer_forward.1} parent=0
    #allocation2 [shape = 'u8[4096]{0}', space=vmem, size = 0x1000, scoped, tag = 'input window, operand 0, single buffered']
    #allocation3 [shape = 's32[1]{0}', space=sflag, size = 0x4, scoped, tag = 'scoped memory for model_with_input_layer_forward.1']
    #allocation4 [shape = 's32[1]{0}', space=sflag, size = 0x4, scoped, tag = 'scoped memory for model_with_input_layer_forward.1']
    #allocation5 [shape = 'u8[16384]{0}', space=vmem, size = 0x4000, scoped, tag = 'input window, operand 1, single buffered']
    #allocation6 [shape = 's32[1]{0}', space=sflag, size = 0x4, scoped, tag = 'scoped memory for model_with_input_layer_forward.1']
    #allocation7 [shape = 'u8[512]{0}', space=vmem, size = 0x400, scoped, tag = 'input window, operand 2, single buffered']
    #allocation8 [shape = 'u8[32768]{0}', space=vmem, size = 0x8000, scoped, tag = 'input window, operand 3, single buffered']
    #allocation9 [shape = 's32[1]{0}', space=sflag, size = 0x4, scoped, tag = 'scoped memory for model_with_input_layer_forward.1']
    #allocation10 [shape = 'u8[512]{0}', space=vmem, size = 0x400, scoped, tag = 'input window, operand 4, single buffered']
    #allocation11 [shape = 'u8[4096]{0}', space=vmem, size = 0x1000, scoped, tag = 'output window, operand 0, single buffered']
    %10 = vsyncpa [#allocation3], 0
    %11 = vsyncpa [#allocation6], 0
    %12 = vsyncpa [#allocation9], 0
    %13 = vsyncpa [#allocation4], 0
    // Predicated region
    $region2: #{model_with_input_layer_forward.1} parent=1 // pred_check
      _
    $region3: #{model_with_input_layer_forward.1} parent=1 // pred_check_branch
      %15 = sbr.rel (0) target = $region5
    $region4: #{model_with_input_layer_forward.1} parent=1 // pred_region
      %s17 = ssub.s32 128, 128
      %18 = vsyncadd [#allocation3], %s17
      %s20 = sshll.u32 [#allocation2], 4
      %s21 = int_to_ptr.vmem [resolvable:$true] %s20
      %23 = dma.hbm_to_vmem [thread:$0]  %s0, 128, %s21, [#allocation3]
    $region5: #{model_with_input_layer_forward.1} parent=1 // pred_fallthru
      _
    // Predicated region
    $region6: #{model_with_input_layer_forward.1} parent=1 // pred_check
      _
    $region7: #{model_with_input_layer_forward.1} parent=1 // pred_check_branch
      %25 = sbr.rel (0) target = $region9
    $region8: #{model_with_input_layer_forward.1} parent=1 // pred_region
      %s27 = ssub.s32 512, 512
      %28 = vsyncadd [#allocation6], %s27
      %s29 = sshll.u32 [#allocation5], 4
      %s30 = int_to_ptr.vmem [resolvable:$true] %s29
      %35 = dma.hbm_to_vmem [thread:$0]  %s1, 512, %s30, [#allocation6], 128, 128, 8
    $region9: #{model_with_input_layer_forward.1} parent=1 // pred_fallthru
      _
    // Predicated region
    $region10: #{model_with_input_layer_forward.1} parent=1 // pred_check
      _
    $region11: #{model_with_input_layer_forward.1} parent=1 // pred_check_branch
      %37 = sbr.rel (0) target = $region13
    $region12: #{model_with_input_layer_forward.1} parent=1 // pred_region
      %s39 = ssub.s32 16, 16
      %40 = vsyncadd [#allocation6], %s39
      %s42 = sshll.u32 [#allocation7], 4
      %s43 = int_to_ptr.vmem [resolvable:$true] %s42
      %45 = dma.hbm_to_vmem [thread:$0]  %s2, 16, %s43, [#allocation6]
    $region13: #{model_with_input_layer_forward.1} parent=1 // pred_fallthru
      _
    // Predicated region
    $region14: #{model_with_input_layer_forward.1} parent=1 // pred_check
      _
    $region15: #{model_with_input_layer_forward.1} parent=1 // pred_check_branch
      %47 = sbr.rel (0) target = $region17
    $region16: #{model_with_input_layer_forward.1} parent=1 // pred_region
      %s49 = ssub.s32 1024, 1024
      %50 = vsyncadd [#allocation9], %s49
      %s51 = sshll.u32 [#allocation8], 4
      %s52 = int_to_ptr.vmem [resolvable:$true] %s51
      %57 = dma.hbm_to_vmem [thread:$0]  %s3, 1024, %s52, [#allocation9], 128, 128, 8
    $region17: #{model_with_input_layer_forward.1} parent=1 // pred_fallthru
      _
    // Predicated region
    $region18: #{model_with_input_layer_forward.1} parent=1 // pred_check
      _
    $region19: #{model_with_input_layer_forward.1} parent=1 // pred_check_branch
      %59 = sbr.rel (0) target = $region21
    $region20: #{model_with_input_layer_forward.1} parent=1 // pred_region
      %s61 = ssub.s32 16, 16
      %62 = vsyncadd [#allocation9], %s61
      %s64 = sshll.u32 [#allocation10], 4
      %s65 = int_to_ptr.vmem [resolvable:$true] %s64
      %67 = dma.hbm_to_vmem [thread:$0]  %s4, 16, %s65, [#allocation9]
    $region21: #{model_with_input_layer_forward.1} parent=1 // pred_fallthru
      _
    // Predicated region
    $region22: #{model_with_input_layer_forward.1} parent=1 // pred_check
      _
    $region23: #{model_with_input_layer_forward.1} parent=1 // pred_check_branch
      %69 = sbr.rel (0) target = $region25
    $region24: #{model_with_input_layer_forward.1} parent=1 // pred_region
      %70 = dma.done [#allocation3], 128
    $region25: #{model_with_input_layer_forward.1} parent=1 // pred_fallthru
      _
    // Predicated region
    $region26: #{model_with_input_layer_forward.1} parent=1 // pred_check
      _
    $region27: #{model_with_input_layer_forward.1} parent=1 // pred_check_branch
      %72 = sbr.rel (0) target = $region29
    $region28: #{model_with_input_layer_forward.1} parent=1 // pred_region
      %73 = dma.done [#allocation6], 512
    $region29: #{model_with_input_layer_forward.1} parent=1 // pred_fallthru
      _
    // Predicated region
    $region30: #{model_with_input_layer_forward.1} parent=1 // pred_check
      _
    $region31: #{model_with_input_layer_forward.1} parent=1 // pred_check_branch
      %75 = sbr.rel (0) target = $region33
    $region32: #{model_with_input_layer_forward.1} parent=1 // pred_region
      %76 = dma.done [#allocation6], 16
    $region33: #{model_with_input_layer_forward.1} parent=1 // pred_fallthru
      _
    // Predicated region
    $region34: #{model_with_input_layer_forward.1} parent=1 // pred_check
      _
    $region35: #{model_with_input_layer_forward.1} parent=1 // pred_check_branch
      %78 = sbr.rel (0) target = $region37
    $region36: #{model_with_input_layer_forward.1} parent=1 // pred_region
      %79 = dma.done [#allocation9], 1024
    $region37: #{model_with_input_layer_forward.1} parent=1 // pred_fallthru
      _
    // Predicated region
    $region38: #{model_with_input_layer_forward.1} parent=1 // pred_check
      _
    $region39: #{model_with_input_layer_forward.1} parent=1 // pred_check_branch
      %81 = sbr.rel (0) target = $region41
    $region40: #{model_with_input_layer_forward.1} parent=1 // pred_region
      %82 = dma.done [#allocation9], 16
    $region41: #{model_with_input_layer_forward.1} parent=1 // pred_fallthru
      _
    %v83 = vld [vmem:[#allocation2] sm:$0xff]
    %v84 = vld [vmem:[#allocation5] sm:$0xff]
    %v85 = vld [vmem:[#allocation5 + $0x8] sm:$0xff]
    %v86 = vld [vmem:[#allocation5 + $0x10] sm:$0xff]
    %v87 = vld [vmem:[#allocation5 + $0x18] sm:$0xff]
    %v88 = vld [vmem:[#allocation7] sm:$0x1]
    %v90 = vlaneseq
    %v91 = vshrl.u32 %v90, 7
    %v92 = vsub.s32 0, %v91
    %v93 = vrot.slane %v88, %v92
    %vm95 = vcmask 261120
    %v97 = vsel %vm95, %v83, 0
    %99 = vmatprep.subr.mxu0 0.0
    %100 = vmatpush1.msra.mxu0 %v84
    %101 = vmatprep.subr.mxu0 0.0
    %102 = vmatpush1.msra.mxu0 %v85
    %103 = vmatprep.subr.mxu0 0.0
    %104 = vmatpush1.msra.mxu0 %v86
    %105 = vmatprep.subr.mxu0 0.0
    %106 = vmatpush1.msra.mxu0 %v87
    %107 = vmatprep.subr.mxu0 0.0
    %108 = vmatpush1.msra.mxu0 0.0
    %109 = vmatprep.subr.mxu0 0.0
    %110 = vmatpush1.msra.mxu0 0.0
    %111 = vmatprep.subr.mxu0 0.0
    %112 = vmatpush1.msra.mxu0 0.0
    %113 = vmatprep.subr.mxu0 0.0
    %114 = vmatpush1.msra.mxu0 0.0
    %115 = vmatprep.subr.mxu0 0.0
    %116 = vmatpush1.msra.mxu0 0.0
    %117 = vmatprep.subr.mxu0 0.0
    %118 = vmatpush1.msra.mxu0 0.0
    %119 = vmatprep.subr.mxu0 0.0
    %120 = vmatpush1.msra.mxu0 0.0
    %121 = vmatprep.subr.mxu0 0.0
    %122 = vmatpush1.msra.mxu0 0.0
    %123 = vmatprep.subr.mxu0 0.0
    %124 = vmatpush1.msra.mxu0 0.0
    %125 = vmatprep.subr.mxu0 0.0
    %126 = vmatpush1.msra.mxu0 0.0
    %127 = vmatprep.subr.mxu0 0.0
    %128 = vmatpush1.msra.mxu0 0.0
    %129 = vmatprep.subr.mxu0 0.0
    %130 = vmatpush1.msra.mxu0 0.0
    %131 = vmatprep.subr.mxu0 0.0
    %132 = vmatpush1.msra.mxu0 0.0
    %133 = vmatprep.subr.mxu0 0.0
    %134 = vmatpush1.msra.mxu0 0.0
    %135 = vmatprep.subr.mxu0 0.0
    %136 = vmatpush1.msra.mxu0 0.0
    %137 = vmatprep.subr.mxu0 0.0
    %138 = vmatpush1.msra.mxu0 0.0
    %139 = vmatprep.subr.mxu0 0.0
    %140 = vmatpush1.msra.mxu0 0.0
    %141 = vmatprep.subr.mxu0 0.0
    %142 = vmatpush1.msra.mxu0 0.0
    %143 = vmatprep.subr.mxu0 0.0
    %144 = vmatpush1.msra.mxu0 0.0
    %145 = vmatprep.subr.mxu0 0.0
    %146 = vmatpush1.msra.mxu0 0.0
    %147 = vmatprep.subr.mxu0 0.0
    %148 = vmatpush1.msra.mxu0 0.0
    %149 = vmatprep.subr.mxu0 0.0
    %150 = vmatpush1.msra.mxu0 0.0
    %151 = vmatprep.subr.mxu0 0.0
    %152 = vmatpush1.msra.mxu0 0.0
    %153 = vmatprep.subr.mxu0 0.0
    %154 = vmatpush1.msra.mxu0 0.0
    %155 = vmatprep.subr.mxu0 0.0
    %156 = vmatpush1.msra.mxu0 0.0
    %157 = vmatprep.subr.mxu0 0.0
    %158 = vmatpush1.msra.mxu0 0.0
    %159 = vmatprep.subr.mxu0 0.0
    %160 = vmatpush1.msra.mxu0 0.0
    %161 = vmatprep.subr.mxu0 0.0
    %162 = vmatpush1.msra.mxu0 0.0
    %163 = vmatprep.mubr.f32.mxu0 0.0
    %164 = vmatmul.mubr.f32.gmra.mrb[0].mxu0 %v97
    %v165 = vpop.f32.mrb[0].mxu0
    %v166 = vadd.f32 %v93, %v165
    %v167 = vpop.f32.mrb[0].mxu0
    %168 = vdwg.mxu0
    %v169 = vmax.f32 %v166, 0.0
    %v170 = vld [vmem:[#allocation8] sm:$0xff]
    %v171 = vld [vmem:[#allocation8 + $0x8] sm:$0xff]
    %v172 = vld [vmem:[#allocation8 + $0x10] sm:$0xff]
    %v173 = vld [vmem:[#allocation8 + $0x18] sm:$0xff]
    %v174 = vld [vmem:[#allocation8 + $0x20] sm:$0xff]
    %v175 = vld [vmem:[#allocation8 + $0x28] sm:$0xff]
    %v176 = vld [vmem:[#allocation8 + $0x30] sm:$0xff]
    %v177 = vld [vmem:[#allocation8 + $0x38] sm:$0xff]
    %v178 = vld [vmem:[#allocation10] sm:$0x1]
    %v180 = vlaneseq
    %v181 = vshrl.u32 %v180, 7
    %v182 = vsub.s32 0, %v181
    %v183 = vrot.slane %v178, %v182
    %vm185 = vcmask 523264
    %v187 = vsel %vm185, %v169, 0
    %189 = vmatprep.subr.mxu0 0.0
    %190 = vmatpush1.msra.mxu0 %v170
    %191 = vmatprep.subr.mxu0 0.0
    %192 = vmatpush1.msra.mxu0 %v171
    %193 = vmatprep.subr.mxu0 0.0
    %194 = vmatpush1.msra.mxu0 %v172
    %195 = vmatprep.subr.mxu0 0.0
    %196 = vmatpush1.msra.mxu0 %v173
    %197 = vmatprep.subr.mxu0 0.0
    %198 = vmatpush1.msra.mxu0 %v174
    %199 = vmatprep.subr.mxu0 0.0
    %200 = vmatpush1.msra.mxu0 %v175
    %201 = vmatprep.subr.mxu0 0.0
    %202 = vmatpush1.msra.mxu0 %v176
    %203 = vmatprep.subr.mxu0 0.0
    %204 = vmatpush1.msra.mxu0 %v177
    %205 = vmatprep.subr.mxu0 0.0
    %206 = vmatpush1.msra.mxu0 0.0
    %207 = vmatprep.subr.mxu0 0.0
    %208 = vmatpush1.msra.mxu0 0.0
    %209 = vmatprep.subr.mxu0 0.0
    %210 = vmatpush1.msra.mxu0 0.0
    %211 = vmatprep.subr.mxu0 0.0
    %212 = vmatpush1.msra.mxu0 0.0
    %213 = vmatprep.subr.mxu0 0.0
    %214 = vmatpush1.msra.mxu0 0.0
    %215 = vmatprep.subr.mxu0 0.0
    %216 = vmatpush1.msra.mxu0 0.0
    %217 = vmatprep.subr.mxu0 0.0
    %218 = vmatpush1.msra.mxu0 0.0
    %219 = vmatprep.subr.mxu0 0.0
    %220 = vmatpush1.msra.mxu0 0.0
    %221 = vmatprep.subr.mxu0 0.0
    %222 = vmatpush1.msra.mxu0 0.0
    %223 = vmatprep.subr.mxu0 0.0
    %224 = vmatpush1.msra.mxu0 0.0
    %225 = vmatprep.subr.mxu0 0.0
    %226 = vmatpush1.msra.mxu0 0.0
    %227 = vmatprep.subr.mxu0 0.0
    %228 = vmatpush1.msra.mxu0 0.0
    %229 = vmatprep.subr.mxu0 0.0
    %230 = vmatpush1.msra.mxu0 0.0
    %231 = vmatprep.subr.mxu0 0.0
    %232 = vmatpush1.msra.mxu0 0.0
    %233 = vmatprep.subr.mxu0 0.0
    %234 = vmatpush1.msra.mxu0 0.0
    %235 = vmatprep.subr.mxu0 0.0
    %236 = vmatpush1.msra.mxu0 0.0
    %237 = vmatprep.subr.mxu0 0.0
    %238 = vmatpush1.msra.mxu0 0.0
    %239 = vmatprep.subr.mxu0 0.0
    %240 = vmatpush1.msra.mxu0 0.0
    %241 = vmatprep.subr.mxu0 0.0
    %242 = vmatpush1.msra.mxu0 0.0
    %243 = vmatprep.subr.mxu0 0.0
    %244 = vmatpush1.msra.mxu0 0.0
    %245 = vmatprep.subr.mxu0 0.0
    %246 = vmatpush1.msra.mxu0 0.0
    %247 = vmatprep.subr.mxu0 0.0
    %248 = vmatpush1.msra.mxu0 0.0
    %249 = vmatprep.subr.mxu0 0.0
    %250 = vmatpush1.msra.mxu0 0.0
    %251 = vmatprep.subr.mxu0 0.0
    %252 = vmatpush1.msra.mxu0 0.0
    %253 = vmatprep.mubr.f32.mxu0 0.0
    %254 = vmatmul.mubr.f32.gmra.mrb[0].mxu0 %v187
    %v255 = vpop.f32.mrb[0].mxu0
    %v256 = vadd.f32 %v183, %v255
    %v257 = vpop.f32.mrb[0].mxu0
    %258 = vdwg.mxu0
    %259 = vst [vmem:[#allocation11] sm:$0xff] %v256
    // Predicated region
    $region42: #{model_with_input_layer_forward.1} parent=1 // pred_check
      _
    $region43: #{model_with_input_layer_forward.1} parent=1 // pred_check_branch
      %261 = sbr.rel (0) target = $region45
    $region44: #{model_with_input_layer_forward.1} parent=1 // pred_region
      %s263 = ssub.s32 128, 128
      %264 = vsyncadd [#allocation4], %s263
      %s266 = sshll.u32 [#allocation11], 4
      %s267 = int_to_ptr.vmem [resolvable:$true] %s266
      %269 = dma.vmem_to_hbm [thread:$0]  %s267, 128, %s5, [#allocation4]
    $region45: #{model_with_input_layer_forward.1} parent=1 // pred_fallthru
      _
    // Predicated region
    $region46: #{model_with_input_layer_forward.1} parent=1 // pred_check
      _
    $region47: #{model_with_input_layer_forward.1} parent=1 // pred_check_branch
      %271 = sbr.rel (0) target = $region49
    $region48: #{model_with_input_layer_forward.1} parent=1 // pred_region
      %272 = dma.done [#allocation4], 128
    $region49: #{model_with_input_layer_forward.1} parent=1 // pred_fallthru
      _
    %273 = vsyncpa [#allocation3], 1
    %274 = vsyncpa [#allocation6], 1
    %275 = vsyncpa [#allocation9], 1
    %276 = vsyncpa [#allocation4], 1

</llo_original>
